<compile_context>
chip_gen: v7x
topology: tpu7x:2x2x1
jax: 0.10.0
libtpu: 0.0.40
codegen_flags: <defaults>
</compile_context>

<pallas_src>
import jax
import jax.numpy as jnp
from jax.experimental import pallas as pl
from jax.experimental.pallas import tpu as pltpu

NUM_STAGES = 2      # operation_count
NUM_OPS = 4         # len(operations) in each SubPolicyStage
TEMPERATURE = 0.05

MAX_TILE_ROWS = 2048        # 2048 x 512 f32 = 4 MiB tile; 4 buffers = 16 MiB
FUSE_MAX_ELEMS = 1 << 18    # fuse same-dtype keys when total <= ~1 MiB f32
VMEM_LIMIT_BYTES = 48 << 20


def _subpolicy_kernel(coef_ref, x_ref, o_ref):
    """Single fused-multiply-add per element.

    coef_ref : SMEM (2,) f32, scalar-prefetched: composed [A, B]
    x_ref    : VMEM (TR, COLS) input tile (native dtype)
    o_ref    : VMEM (TR, COLS) output tile (same dtype as input)
    """
    cur = x_ref[...].astype(jnp.float32)
    o_ref[...] = (coef_ref[0] * cur + coef_ref[1]).astype(o_ref.dtype)


def _composed_affine_coeffs(raw_weights, magnitudes, temperature):
    """Collapse every stage's softmax mixture of affine ops to (a_s, b_s) and
    compose all stages into a single (A, B) so that SubPolicy(x) = A*x + B.

    Per stage:
      out_s(x) = w0*x + w1*(x+m1) + w2*((x-0.5)*(1+m2)+0.5) + w3*(1-x)
               = a_s * x + b_s
      a_s = w0 + w1 + w2*(1+m2) - w3
      b_s = w1*m1 - 0.5*w2*m2 + w3
    TODO(synk): this collapse (and the whole scalar-prefetch design) is only
    valid for the element-wise affine placeholder ops above.
    """
    w = jax.nn.softmax(raw_weights.astype(jnp.float32) / temperature, axis=-1)
    m = magnitudes.astype(jnp.float32)
    a_s = w[:, 0] + w[:, 1] + w[:, 2] * (1.0 + m[:, 2]) - w[:, 3]
    b_s = w[:, 1] * m[:, 1] - 0.5 * w[:, 2] * m[:, 2] + w[:, 3]

    A = jnp.float32(1.0)
    B = jnp.float32(0.0)
    for s in range(NUM_STAGES):          # stage s applied after stage s-1
        A = a_s[s] * A
        B = a_s[s] * B + b_s[s]
    return jnp.stack([A, B])             # (2,) f32


def _run_flat(x_flat, coeffs):
    """Apply the composed affine to a flat 1-D array; returns flat 1-D array
    of the same length and dtype."""
    n = x_flat.size
    dtype = x_flat.dtype

    # Lane-dense width that divides n exactly -> no jnp.pad / [:n] slice pass.
    cols = None
    for c in (512, 256, 128):
        if n % c == 0:
            cols = c
            break
    padded = False
    if cols is None:
        # TODO(synk): ragged sizes (n % 128 != 0) fall back to a pad+slice
        # path; real NCHW image tensors essentially never hit this.
        cols = 128
        n_pad = (-(-n // cols)) * cols
        x_flat = jnp.pad(x_flat, (0, n_pad - n))
        padded = True

    rows = x_flat.size // cols
    x2d = x_flat.reshape(rows, cols)

    # Full-array block when small; otherwise fixed tiles with a (masked)
    # partial last block -- no data padding needed either way.
    tile_rows = rows if rows <= MAX_TILE_ROWS else MAX_TILE_ROWS
    grid = (pl.cdiv(rows, tile_rows),)

    itemsize = jnp.dtype(dtype).itemsize
    cost = pl.CostEstimate(
        flops=2 * rows * cols,
        transcendentals=0,
        bytes_accessed=2 * rows * cols * itemsize,
    )

    grid_spec = pltpu.PrefetchScalarGridSpec(
        num_scalar_prefetch=1,           # composed (A, B) -> SMEM
        grid=grid,
        in_specs=[pl.BlockSpec((tile_rows, cols), lambda i, c: (i, 0))],
        out_specs=pl.BlockSpec((tile_rows, cols), lambda i, c: (i, 0)),
    )
    out2d = pl.pallas_call(
        _subpolicy_kernel,
        out_shape=jax.ShapeDtypeStruct((rows, cols), dtype),
        grid_spec=grid_spec,
        compiler_params=pltpu.CompilerParams(
            # Row tiles are independent -> shard across v7x's 2 TCs.
            dimension_semantics=("parallel",),
            vmem_limit_bytes=VMEM_LIMIT_BYTES),
        cost_estimate=cost,
    )(coeffs, x2d)

    out_flat = out2d.reshape(-1)
    return out_flat[:n] if padded else out_flat


def subpolicy_forward(input_dict, raw_weights, magnitudes,
                      temperature=TEMPERATURE):
    """SubPolicy.forward over a Dict[str, Tensor] of NCHW images.

    raw_weights: (NUM_STAGES, NUM_OPS) -- the nn.Parameter of each stage.
    Softmax + affine composition is tiny parameter glue done in plain JAX;
    all per-pixel work runs in the kernel.  Outputs preserve input dtypes.
    """
    coeffs = _composed_affine_coeffs(raw_weights, magnitudes, temperature)
    out = {}

    # Group same-dtype keys; fuse small groups into one pallas_call to
    # amortize per-call launch overhead (dominant for small images).  Large
    # groups run per key to avoid the extra concat/split HBM passes.
    groups = {}
    for k, v in input_dict.items():
        groups.setdefault(jnp.dtype(v.dtype), []).append(k)

    for _, keys in groups.items():
        total = sum(int(input_dict[k].size) for k in keys)
        if len(keys) > 1 and total <= FUSE_MAX_ELEMS:
            flat = jnp.concatenate([input_dict[k].reshape(-1) for k in keys])
            res = _run_flat(flat, coeffs)
            off = 0
            for k in keys:
                x = input_dict[k]
                nk = int(x.size)
                out[k] = res[off:off + nk].reshape(x.shape)
                off += nk
        else:
            for k in keys:
                x = input_dict[k]
                out[k] = _run_flat(x.reshape(-1), coeffs).reshape(x.shape)

    return {k: out[k] for k in input_dict}   # original key order


def _reference_forward(input_dict, raw_weights, magnitudes,
                       temperature=TEMPERATURE):
    """Pure-JAX reference mirroring the PyTorch forward (un-collapsed mixture)."""
    w = jax.nn.softmax(raw_weights.astype(jnp.float32) / temperature, axis=-1)
    out = {}
    for k, x in input_dict.items():
        cur = x.astype(jnp.float32)
        for s in range(NUM_STAGES):
            ops = jnp.stack([
                cur,
                cur + magnitudes[s, 1],
                (cur - 0.5) * (1.0 + magnitudes[s, 2]) + 0.5,
                1.0 - cur,
            ])  # (NUM_OPS, ...)
            cur = (ops * w[s].reshape((-1,) + (1,) * cur.ndim)).sum(0)
        out[k] = cur.astype(x.dtype)
    return out


if __name__ == "__main__":
    key = jax.random.PRNGKey(0)
    k_img, k_mask, k_w = jax.random.split(key, 3)

    B, C, H, W = 2, 4, 16, 16
    x = jax.random.uniform(k_img, (B, C, H, W), dtype=jnp.float32)
    mask = jax.random.uniform(k_mask, (B, 1, H, W), dtype=jnp.float32)

    # Parameter shapes from __init__: each stage owns weights of shape
    # (NUM_OPS,); values chosen deterministically (nontrivial, not torch.ones).
    raw_weights = 0.1 * jax.random.normal(k_w, (NUM_STAGES, NUM_OPS),
                                          dtype=jnp.float32) + 1.0
    magnitudes = jnp.linspace(0.05, 0.4, NUM_STAGES * NUM_OPS,
                              dtype=jnp.float32).reshape(NUM_STAGES, NUM_OPS)

    inp = {"image": x, "mask": mask}

    out = subpolicy_forward(inp, raw_weights, magnitudes)
    jax.block_until_ready(out["image"])

    ref = _reference_forward(inp, raw_weights, magnitudes)
    for k in inp:
        assert out[k].shape == inp[k].shape
        assert out[k].dtype == inp[k].dtype, \
            f"dtype not preserved for '{k}': {out[k].dtype} vs {inp[k].dtype}"
        assert jnp.allclose(out[k].astype(jnp.float32),
                            ref[k].astype(jnp.float32),
                            atol=1e-5, rtol=1e-5), \
            f"Pallas kernel does not match JAX reference for '{k}'"

    print("KERNEL_OK")
</pallas_src>

<mosaic_0001>
module attributes {stable_mosaic.version = 11 : i64} {
  func.func @_subpolicy_kernel(%arg0: i32, %arg1: memref<2xf32, #tpu.memory_space<smem>>, %arg2: memref<5x512xf32, #tpu.memory_space<vmem>>, %arg3: memref<5x512xf32, #tpu.memory_space<vmem>>) attributes {dimension_semantics = [#tpu.dimension_semantics<parallel>], iteration_bounds = array<i64: 1>, scalar_prefetch = 1 : i64, scratch_operands = 0 : i64, tpu.core_type = #tpu.core_type<tc>, window_params = [{transform_indices = @transform_0, window_bounds = array<i64: 5, 512>}, {transform_indices = @transform_1, window_bounds = array<i64: 5, 512>}]} {
    %c0 = arith.constant 0 : index
    %c0_0 = arith.constant 0 : index
    %0 = vector.load %arg2[%c0, %c0_0] : memref<5x512xf32, #tpu.memory_space<vmem>>, vector<5x512xf32>
    %c0_1 = arith.constant 0 : index
    %1 = memref.load %arg1[%c0_1] : memref<2xf32, #tpu.memory_space<smem>>
    %2 = vector.broadcast %1 : f32 to vector<5x512xf32>
    %3 = arith.mulf %2, %0 : vector<5x512xf32>
    %c1 = arith.constant 1 : index
    %4 = memref.load %arg1[%c1] : memref<2xf32, #tpu.memory_space<smem>>
    %5 = vector.broadcast %4 : f32 to vector<5x512xf32>
    %6 = arith.addf %3, %5 : vector<5x512xf32>
    %c0_2 = arith.constant 0 : index
    %c0_3 = arith.constant 0 : index
    %7 = vector.load %arg3[%c0_2, %c0_3] : memref<5x512xf32, #tpu.memory_space<vmem>>, vector<5x512xf32>
    tpu.vector_store %arg3[%c0_2, %c0_3], %6 {strides = array<i32>} : memref<5x512xf32, #tpu.memory_space<vmem>>, vector<5x512xf32>,
    return
  }
  func.func @transform_0(%arg0: i32, %arg1: memref<2xf32, #tpu.memory_space<smem>>) -> (i32, i32) {
    %c0_i32 = arith.constant 0 : i32
    %c0_i32_0 = arith.constant 0 : i32
    return %arg0, %c0_i32 : i32, i32
  }
  func.func @transform_1(%arg0: i32, %arg1: memref<2xf32, #tpu.memory_space<smem>>) -> (i32, i32) {
    %c0_i32 = arith.constant 0 : i32
    %c0_i32_0 = arith.constant 0 : i32
    return %arg0, %c0_i32 : i32, i32
  }
}

</mosaic_0001>

<llo_original>
// kernel: tpu_custom_call.1
$region0: #{tpu_custom_call.1}
  #allocation0 [shape = 'u32[]', space=smem, size = 0x4, offset = 0x4, fixed_abs, tag = 'smem constant byte address 0x4 - core index']
  #allocation1 [shape = 'u32[144,128]{1,0:T(1,128)}', space=vmem, size = 0x12000, scoped, tag = 'internal scratch']
  #allocation2 [shape = 's32[1]{0}', space=sflag, size = 0x4, scoped, tag = 'scoped memory for tpu_custom_call.1']
  #allocation3 [shape = 'u8[512]{0}', space=smem, size = 0x200, scoped, tag = 'prefetched SMEM operand 0']
  %s0 = inlined_call_operand.hbm [shape: f32[2], index: 0, kind: input, shape index: {}]
  %s1 = inlined_call_operand.hbm [shape: f32[5,512], index: 1, kind: input, shape index: {}]
  %s2 = inlined_call_operand.hbm [shape: f32[5,512], index: 2, kind: output, shape index: {}]
  %s3 = sld [smem:[#allocation0]]
  $region18: #{tpu_custom_call.1} parent=0
    _
  %s5 = ssub.s32 1, %s3
  %s6 = scalar_select 0, %s5, %s3
  %8 = dma.hbm_to_smem %s0, 16, [#allocation3], [#allocation2]
  %9 = dma.done [#allocation2], 16
  %10 = sfence
  $region1: #{tpu_custom_call.1} parent=0
    #allocation4 [shape = 'u8[16384]{0}', space=vmem, size = 0x4000, scoped, tag = 'input window, operand 1, single buffered']
    #allocation5 [shape = 's32[1]{0}', space=sflag, size = 0x4, scoped, tag = 'scoped memory for tpu_custom_call.1']
    #allocation6 [shape = 's32[1]{0}', space=sflag, size = 0x4, scoped, tag = 'scoped memory for tpu_custom_call.1']
    #allocation7 [shape = 'u8[16384]{0}', space=vmem, size = 0x4000, scoped, tag = 'output window, operand 0, single buffered']
    %11 = vsyncpa [#allocation5], 0
    %12 = vsyncpa [#allocation6], 0
    // Predicated region
    $region2: #{tpu_custom_call.1} parent=1 // pred_check
      _
    $region3: #{tpu_custom_call.1} parent=1 // pred_check_branch
      %14 = sbr.rel (0) target = $region5
    $region4: #{tpu_custom_call.1} parent=1 // pred_region
      %s16 = ssub.s32 512, 512
      %17 = vsyncadd [#allocation5], %s16
      %s19 = sshll.u32 [#allocation4], 4
      %s20 = int_to_ptr.vmem [resolvable:$true] %s19
      %22 = dma.hbm_to_vmem [thread:$0]  %s1, 512, %s20, [#allocation5]
    $region5: #{tpu_custom_call.1} parent=1 // pred_fallthru
      _
    // Predicated region
    $region6: #{tpu_custom_call.1} parent=1 // pred_check
      _
    $region7: #{tpu_custom_call.1} parent=1 // pred_check_branch
      %24 = sbr.rel (0) target = $region9
    $region8: #{tpu_custom_call.1} parent=1 // pred_region
      %25 = dma.done [#allocation5], 512
    $region9: #{tpu_custom_call.1} parent=1 // pred_fallthru
      _
    %v26 = vld [vmem:[#allocation4] sm:$0x1f]
    %v27 = vld [vmem:[#allocation4 + $0x8] sm:$0x1f]
    %v28 = vld [vmem:[#allocation4 + $0x10] sm:$0x1f]
    %v29 = vld [vmem:[#allocation4 + $0x18] sm:$0x1f]
    %s30 = sld [smem:[#allocation3]]
    %v31 = vstv %s30
    %v32 = vmul.f32 %v31, %v26
    %v33 = vmul.f32 %v31, %v27
    %v34 = vmul.f32 %v31, %v28
    %v35 = vmul.f32 %v31, %v29
    %s36 = sld [smem:[#allocation3 + $0x1]]
    %v37 = vstv %s36
    %v38 = vadd.f32 %v32, %v37
    %v39 = vadd.f32 %v33, %v37
    %v40 = vadd.f32 %v34, %v37
    %v41 = vadd.f32 %v35, %v37
    %42 = vst [vmem:[#allocation7] sm:$0x1f] %v38
    %43 = vst [vmem:[#allocation7 + $0x8] sm:$0x1f] %v39
    %44 = vst [vmem:[#allocation7 + $0x10] sm:$0x1f] %v40
    %45 = vst [vmem:[#allocation7 + $0x18] sm:$0x1f] %v41
    // Predicated region
    $region10: #{tpu_custom_call.1} parent=1 // pred_check
      _
    $region11: #{tpu_custom_call.1} parent=1 // pred_check_branch
      %47 = sbr.rel (0) target = $region13
    $region12: #{tpu_custom_call.1} parent=1 // pred_region
      %s49 = ssub.s32 512, 512
      %50 = vsyncadd [#allocation6], %s49
      %s52 = sshll.u32 [#allocation7], 4
      %s53 = int_to_ptr.vmem [resolvable:$true] %s52
      %55 = dma.vmem_to_hbm [thread:$0]  %s53, 512, %s2, [#allocation6]
    $region13: #{tpu_custom_call.1} parent=1 // pred_fallthru
      _
    // Predicated region
    $region14: #{tpu_custom_call.1} parent=1 // pred_check
      _
    $region15: #{tpu_custom_call.1} parent=1 // pred_check_branch
      %57 = sbr.rel (0) target = $region17
    $region16: #{tpu_custom_call.1} parent=1 // pred_region
      %58 = dma.done [#allocation6], 512
    $region17: #{tpu_custom_call.1} parent=1 // pred_fallthru
      _
    %59 = vsyncpa [#allocation5], 1
    %60 = vsyncpa [#allocation6], 1

</llo_original>
